<compile_context>
chip_gen: v6e
topology: v6e:2x2x1
jax: 0.10.0
libtpu: 0.0.40
codegen_flags: <defaults>
</compile_context>

<pallas_src>
import functools

import jax
import jax.numpy as jnp
from jax.experimental import pallas as pl
from jax.experimental.pallas import tpu as pltpu


def _sigmoid(x):
    # sigmoid(x) == 0.5 * (1 + tanh(x/2)); one EUP push per gate (no exp+recip).
    return 0.5 * (jnp.tanh(0.5 * x) + 1.0)


def _lstm_cell_kernel(x_ref, h_ref, c_ref, w_ref, b_ref,
                      h_out_ref, c_out_ref, *, th):
    # x_ref: [tb, Dx]   h_ref: [tb, H]   c_ref: [tb, th]
    # w_ref: [Dx+H, 4*th]  (lane-contiguous gates (f, i, c~, o) of THIS h-tile)
    # b_ref: [1, 4*th]
    w = w_ref[...]

    # In-kernel concat (cheap VPU/XLU copy, O(tb*(Dx+H))) -> one fused MXU
    # matmul with K=Dx+H and N=4*th instead of 8 small per-gate matmuls.
    xh = jnp.concatenate([x_ref[...], h_ref[...]], axis=1).astype(w.dtype)
    acc = jnp.dot(xh, w, preferred_element_type=jnp.float32)
    acc = acc + b_ref[...].astype(jnp.float32)

    # Gates live in lane-contiguous th-wide slices of the fused accumulator.
    f = _sigmoid(acc[:, 0 * th:1 * th])
    i = _sigmoid(acc[:, 1 * th:2 * th])
    ct = jnp.tanh(acc[:, 2 * th:3 * th])
    ot = _sigmoid(acc[:, 3 * th:4 * th])

    c_new = f * c_ref[...].astype(jnp.float32) + i * ct
    h_new = ot * jnp.tanh(c_new)

    h_out_ref[...] = h_new.astype(h_out_ref.dtype)
    c_out_ref[...] = c_new.astype(c_out_ref.dtype)


def _physical_vmem_bytes():
    """Per-TensorCore VMEM capacity, with a conservative (v7x) fallback."""
    try:
        info = pltpu.get_tpu_info()
        for attr in ("vmem_capacity_bytes", "vmem_bytes", "vmem_size_bytes"):
            v = getattr(info, attr, None)
            if v:
                return int(v)
    except Exception:
        pass
    return 64 * 1024 * 1024


def _pick_batch_tile(B):
    for t in (256, 128, 64, 32, 16, 8):
        if B % t == 0:
            return t
    return B


def _pick_hidden_tile(Dx, H, tb, w_itemsize, act_itemsize, vmem_budget):
    """Largest th (full H, else a multiple of 128 dividing H) whose working
    set fits ~60% of the VMEM budget, assuming double-buffered weight blocks."""
    K = Dx + H
    candidates = [H] + [t for t in (512, 256, 128) if t < H and H % t == 0]
    for th in candidates:
        weight_bytes = 2 * K * 4 * th * w_itemsize           # W double-buffered
        bias_bytes = 2 * 8 * 4 * th * 4                      # padded to 8 sublanes
        act_bytes = 2 * tb * (Dx + H + th) * act_itemsize    # x, h, c
        out_bytes = 2 * 2 * tb * th * act_itemsize           # h_new, c_new
        acc_bytes = tb * 4 * th * 4                          # f32 fused accumulator
        if (weight_bytes + bias_bytes + act_bytes + out_bytes + acc_bytes
                <= 0.6 * vmem_budget):
            return th
    return candidates[-1]


def pack_lstm_params(params, hidden_tile=None, weight_dtype=None,
                     batch_hint=256):
    """One-time packing of the 8 PyTorch-Linear-style params (call at init).

    params = (wf, bf, wi, bi, wc, bc, wo, bo); each w is [H, Dx+H] (PyTorch
    Linear: out = xh @ w.T + b; columns [0:Dx] multiply x, [Dx:] multiply h).

    Returns a dict with:
      W  [Dx+H, 4*H]: columns ordered (hidden_tile, gate, within_tile), so a
                      lane-contiguous block of width 4*th holds all 4 gates of
                      one hidden tile -> a single fused MXU matmul per step.
      b  [1, 4*H]   : same column ordering (kept f32 for accuracy).
      th            : hidden tile size the packing was built for.
    Gate order within each tile: (f, i, c~, o).

    Set weight_dtype=jnp.bfloat16 on v6e/v7x to halve weight bandwidth/VMEM
    (kernel keeps f32 accumulation and f32 gating/state math).
    """
    wf, bf, wi, bi, wc, bc, wo, bo = params
    H = wf.shape[0]
    Dx = wf.shape[1] - H
    K = Dx + H

    w_itemsize = jnp.dtype(weight_dtype or wf.dtype).itemsize
    if hidden_tile is None:
        hidden_tile = _pick_hidden_tile(
            Dx, H, min(batch_hint, 256), w_itemsize,
            jnp.dtype(wf.dtype).itemsize, _physical_vmem_bytes())
    th = hidden_tile
    assert H % th == 0, "hidden_tile must divide hidden_dim"
    nt = H // th

    Wg = jnp.stack([wf, wi, wc, wo], axis=0)                # [4, H, K]
    Wg = Wg.reshape(4, nt, th, K)                           # [4, nt, th, K]
    W = jnp.transpose(Wg, (3, 1, 0, 2)).reshape(K, 4 * H)   # [K, nt*4*th]

    bg = jnp.stack([bf, bi, bc, bo], axis=0).reshape(4, nt, th)
    b = jnp.transpose(bg, (1, 0, 2)).reshape(1, 4 * H).astype(jnp.float32)

    if weight_dtype is not None:
        W = W.astype(weight_dtype)

    return {"W": W, "b": b, "th": th, "Dx": Dx, "H": H}


def lstm_cell_forward(x, state, packed):
    """Mirrors LSTMCell.forward: returns (h_new, (h_new, c_new)).

    `packed` must come from `pack_lstm_params` (packed once at init).
    """
    h, c = state
    W, b, th = packed["W"], packed["b"], packed["th"]
    Dx, H = packed["Dx"], packed["H"]
    B = x.shape[0]
    K = Dx + H

    tb = _pick_batch_tile(B)
    # v7x megacore: if the grid would collapse to a single step, split the
    # batch tile so both TensorCores get work (only when B is big enough).
    if (H // th) * (B // tb) == 1 and tb >= 16 and (tb // 2) % 8 == 0:
        tb //= 2

    grid = (H // th, B // tb)   # weights vary only along the outer (H) axis
    n_h_tiles = H // th

    vmem_phys = _physical_vmem_bytes()
    vmem_limit = min(int(0.85 * vmem_phys), 110 * 1024 * 1024)

    # Weight/bias block index depends only on the outer H-tile axis; when the
    # inner batch loop is long, single-buffer them (the one exposed DMA per
    # H tile is amortized over B//tb steps, and halving weight VMEM lets th
    # grow on 64 MiB parts).
    single_buffer_weights = (B // tb) >= 4

    def _wspec(shape):
        if single_buffer_weights:
            return pl.BlockSpec(shape, lambda hj, bi: (0, hj),
                                pipeline_mode=pl.Buffered(buffer_count=1))
        return pl.BlockSpec(shape, lambda hj, bi: (0, hj))

    act_itemsize = x.dtype.itemsize
    flops = 2 * B * K * 4 * H
    bytes_accessed = (
        n_h_tiles * B * (Dx + H) * act_itemsize        # x, h re-read per H tile
        + B * H * c.dtype.itemsize                     # c
        + W.size * W.dtype.itemsize
        + b.size * b.dtype.itemsize
        + 2 * B * H * h.dtype.itemsize                 # h_new, c_new
    )

    h_new, c_new = pl.pallas_call(
        functools.partial(_lstm_cell_kernel, th=th),
        grid=grid,
        in_specs=[
            pl.BlockSpec((tb, Dx), lambda hj, bi: (bi, 0)),     # x
            pl.BlockSpec((tb, H), lambda hj, bi: (bi, 0)),      # h (full H)
            pl.BlockSpec((tb, th), lambda hj, bi: (bi, hj)),    # c
            _wspec((K, 4 * th)),                                # fused W
            _wspec((1, 4 * th)),                                # fused bias
        ],
        out_specs=(
            pl.BlockSpec((tb, th), lambda hj, bi: (bi, hj)),    # h_new
            pl.BlockSpec((tb, th), lambda hj, bi: (bi, hj)),    # c_new
        ),
        out_shape=(
            jax.ShapeDtypeStruct((B, H), h.dtype),
            jax.ShapeDtypeStruct((B, H), c.dtype),
        ),
        # c (input index 2) aliases c_new (output index 1): in-place state
        # update when the caller donates c.
        input_output_aliases={2: 1},
        compiler_params=pltpu.CompilerParams(
            dimension_semantics=("parallel", "parallel"),
            vmem_limit_bytes=vmem_limit,
        ),
        cost_estimate=pl.CostEstimate(
            flops=flops,
            transcendentals=5 * B * H,
            bytes_accessed=bytes_accessed,
        ),
    )(x, h, c, W, b)

    return h_new, (h_new, c_new)


def _init_params(key, input_dim, hidden_dim, dtype=jnp.float32):
    """Deterministic PyTorch-Linear-style init: U(-k, k), k = 1/sqrt(fan_in)."""
    fan_in = input_dim + hidden_dim
    bound = 1.0 / jnp.sqrt(fan_in)
    keys = jax.random.split(key, 8)
    params = []
    for g in range(4):
        w = jax.random.uniform(keys[2 * g], (hidden_dim, fan_in),
                               dtype=dtype, minval=-bound, maxval=bound)
        bb = jax.random.uniform(keys[2 * g + 1], (hidden_dim,),
                                dtype=dtype, minval=-bound, maxval=bound)
        params += [w, bb]
    return tuple(params)


def _reference_forward(x, state, params):
    """Pure-JAX reference with identical semantics (for verification)."""
    h, c = state
    wf, bf, wi, bi, wc, bc, wo, bo = params
    xh = jnp.concatenate([x, h], axis=1)
    f = jax.nn.sigmoid(xh @ wf.T + bf)
    i = jax.nn.sigmoid(xh @ wi.T + bi)
    ct = jnp.tanh(xh @ wc.T + bc)
    ot = jax.nn.sigmoid(xh @ wo.T + bo)
    c_new = f * c + i * ct
    h_new = ot * jnp.tanh(c_new)
    return h_new, (h_new, c_new)


if __name__ == "__main__":
    batch, input_dim, hidden_dim = 2, 16, 32

    key = jax.random.PRNGKey(0)
    kx, kh, kc, kp = jax.random.split(key, 4)

    x = jax.random.normal(kx, (batch, input_dim), dtype=jnp.float32)
    h0 = jax.random.normal(kh, (batch, hidden_dim), dtype=jnp.float32)
    c0 = jax.random.normal(kc, (batch, hidden_dim), dtype=jnp.float32)

    raw_params = _init_params(kp, input_dim, hidden_dim)
    # Pack once (outside any per-step path).  Use weight_dtype=jnp.bfloat16 on
    # v6e/v7x for production; kept f32 here so the 1e-5 reference check holds.
    packed = pack_lstm_params(raw_params, batch_hint=batch)

    h_out, (h_state, c_state) = lstm_cell_forward(x, (h0, c0), packed)
    jax.block_until_ready((h_out, h_state, c_state))

    # Silent numerical check against pure-JAX reference.
    h_ref, (_, c_ref) = _reference_forward(x, (h0, c0), raw_params)
    assert jnp.allclose(h_out, h_ref, atol=1e-5, rtol=1e-5)
    assert jnp.allclose(c_state, c_ref, atol=1e-5, rtol=1e-5)

    print("KERNEL_OK")
</pallas_src>

<mosaic_0001>
module attributes {stable_mosaic.version = 11 : i64} {
  func.func @_lstm_cell_kernel(%arg0: i32, %arg1: i32, %arg2: memref<2x16xf32, #tpu.memory_space<vmem>>, %arg3: memref<2x32xf32, #tpu.memory_space<vmem>>, %arg4: memref<2x32xf32, #tpu.memory_space<vmem>>, %arg5: memref<48x128xf32, #tpu.memory_space<vmem>>, %arg6: memref<1x128xf32, #tpu.memory_space<vmem>>, %arg7: memref<2x32xf32, #tpu.memory_space<vmem>>, %arg8: memref<2x32xf32, #tpu.memory_space<vmem>>) attributes {dimension_semantics = [#tpu.dimension_semantics<parallel>, #tpu.dimension_semantics<parallel>], iteration_bounds = array<i64: 1, 1>, scalar_prefetch = 0 : i64, scratch_operands = 0 : i64, tpu.core_type = #tpu.core_type<tc>, window_params = [{transform_indices = @transform_0, window_bounds = array<i64: 2, 16>}, {transform_indices = @transform_1, window_bounds = array<i64: 2, 32>}, {transform_indices = @transform_2, window_bounds = array<i64: 2, 32>}, {transform_indices = @transform_3, window_bounds = array<i64: 48, 128>}, {transform_indices = @transform_4, window_bounds = array<i64: 1, 128>}, {transform_indices = @transform_5, window_bounds = array<i64: 2, 32>}, {transform_indices = @transform_6, window_bounds = array<i64: 2, 32>}]} {
    %c0 = arith.constant 0 : index
    %c0_0 = arith.constant 0 : index
    %0 = vector.load %arg5[%c0, %c0_0] : memref<48x128xf32, #tpu.memory_space<vmem>>, vector<48x128xf32>
    %c0_1 = arith.constant 0 : index
    %c0_2 = arith.constant 0 : index
    %1 = vector.load %arg2[%c0_1, %c0_2] : memref<2x16xf32, #tpu.memory_space<vmem>>, vector<2x16xf32>
    %c0_3 = arith.constant 0 : index
    %c0_4 = arith.constant 0 : index
    %2 = vector.load %arg3[%c0_3, %c0_4] : memref<2x32xf32, #tpu.memory_space<vmem>>, vector<2x32xf32>
    %3 = tpu.concatenate %1, %2 in 1 : vector<2x16xf32>, vector<2x32xf32> -> vector<2x48xf32>
    %cst = arith.constant dense<0.000000e+00> : vector<2x128xf32>
    %4 = tpu.matmul %3, %0, %cst {dimension_numbers = #tpu.dot_dimension_numbers<[1], [0], [0], [1], [0, 0, 1, 1], [], []>} : vector<2x48xf32>, vector<48x128xf32>, vector<2x128xf32> -> vector<2x128xf32>
    %c0_5 = arith.constant 0 : index
    %c0_6 = arith.constant 0 : index
    %5 = vector.load %arg6[%c0_5, %c0_6] : memref<1x128xf32, #tpu.memory_space<vmem>>, vector<1x128xf32>
    %6 = vector.broadcast %5 : vector<1x128xf32> to vector<2x128xf32>
    %7 = arith.addf %4, %6 : vector<2x128xf32>
    %8 = vector.extract_strided_slice %7 {offsets = [0, 0], sizes = [2, 32], strides = [1, 1]} : vector<2x128xf32> to vector<2x32xf32>
    %cst_7 = arith.constant 5.000000e-01 : f32
    %9 = vector.broadcast %cst_7 : f32 to vector<2x32xf32>
    %10 = arith.mulf %9, %8 : vector<2x32xf32>
    %11 = math.tanh %10 : vector<2x32xf32>
    %cst_8 = arith.constant 1.000000e+00 : f32
    %12 = vector.broadcast %cst_8 : f32 to vector<2x32xf32>
    %13 = arith.addf %11, %12 : vector<2x32xf32>
    %cst_9 = arith.constant 5.000000e-01 : f32
    %14 = vector.broadcast %cst_9 : f32 to vector<2x32xf32>
    %15 = arith.mulf %14, %13 : vector<2x32xf32>
    %16 = vector.extract_strided_slice %7 {offsets = [0, 32], sizes = [2, 32], strides = [1, 1]} : vector<2x128xf32> to vector<2x32xf32>
    %cst_10 = arith.constant 5.000000e-01 : f32
    %17 = vector.broadcast %cst_10 : f32 to vector<2x32xf32>
    %18 = arith.mulf %17, %16 : vector<2x32xf32>
    %19 = math.tanh %18 : vector<2x32xf32>
    %cst_11 = arith.constant 1.000000e+00 : f32
    %20 = vector.broadcast %cst_11 : f32 to vector<2x32xf32>
    %21 = arith.addf %19, %20 : vector<2x32xf32>
    %cst_12 = arith.constant 5.000000e-01 : f32
    %22 = vector.broadcast %cst_12 : f32 to vector<2x32xf32>
    %23 = arith.mulf %22, %21 : vector<2x32xf32>
    %24 = vector.extract_strided_slice %7 {offsets = [0, 64], sizes = [2, 32], strides = [1, 1]} : vector<2x128xf32> to vector<2x32xf32>
    %25 = math.tanh %24 : vector<2x32xf32>
    %26 = vector.extract_strided_slice %7 {offsets = [0, 96], sizes = [2, 32], strides = [1, 1]} : vector<2x128xf32> to vector<2x32xf32>
    %cst_13 = arith.constant 5.000000e-01 : f32
    %27 = vector.broadcast %cst_13 : f32 to vector<2x32xf32>
    %28 = arith.mulf %27, %26 : vector<2x32xf32>
    %29 = math.tanh %28 : vector<2x32xf32>
    %cst_14 = arith.constant 1.000000e+00 : f32
    %30 = vector.broadcast %cst_14 : f32 to vector<2x32xf32>
    %31 = arith.addf %29, %30 : vector<2x32xf32>
    %cst_15 = arith.constant 5.000000e-01 : f32
    %32 = vector.broadcast %cst_15 : f32 to vector<2x32xf32>
    %33 = arith.mulf %32, %31 : vector<2x32xf32>
    %c0_16 = arith.constant 0 : index
    %c0_17 = arith.constant 0 : index
    %34 = vector.load %arg4[%c0_16, %c0_17] : memref<2x32xf32, #tpu.memory_space<vmem>>, vector<2x32xf32>
    %35 = arith.mulf %15, %34 : vector<2x32xf32>
    %36 = arith.mulf %23, %25 : vector<2x32xf32>
    %37 = arith.addf %35, %36 : vector<2x32xf32>
    %38 = math.tanh %37 : vector<2x32xf32>
    %39 = arith.mulf %33, %38 : vector<2x32xf32>
    %c0_18 = arith.constant 0 : index
    %c0_19 = arith.constant 0 : index
    %40 = vector.load %arg7[%c0_18, %c0_19] : memref<2x32xf32, #tpu.memory_space<vmem>>, vector<2x32xf32>
    tpu.vector_store %arg7[%c0_18, %c0_19], %39 {strides = array<i32>} : memref<2x32xf32, #tpu.memory_space<vmem>>, vector<2x32xf32>,
    %c0_20 = arith.constant 0 : index
    %c0_21 = arith.constant 0 : index
    %41 = vector.load %arg8[%c0_20, %c0_21] : memref<2x32xf32, #tpu.memory_space<vmem>>, vector<2x32xf32>
    tpu.vector_store %arg8[%c0_20, %c0_21], %37 {strides = array<i32>} : memref<2x32xf32, #tpu.memory_space<vmem>>, vector<2x32xf32>,
    return
  }
  func.func @transform_0(%arg0: i32, %arg1: i32) -> (i32, i32) {
    %c0_i32 = arith.constant 0 : i32
    %c0_i32_0 = arith.constant 0 : i32
    return %arg1, %c0_i32 : i32, i32
  }
  func.func @transform_1(%arg0: i32, %arg1: i32) -> (i32, i32) {
    %c0_i32 = arith.constant 0 : i32
    %c0_i32_0 = arith.constant 0 : i32
    return %arg1, %c0_i32 : i32, i32
  }
  func.func @transform_2(%arg0: i32, %arg1: i32) -> (i32, i32) {
    %c0_i32 = arith.constant 0 : i32
    return %arg1, %arg0 : i32, i32
  }
  func.func @transform_3(%arg0: i32, %arg1: i32) -> (i32, i32) {
    %c0_i32 = arith.constant 0 : i32
    %c0_i32_0 = arith.constant 0 : i32
    return %c0_i32, %arg0 : i32, i32
  }
  func.func @transform_4(%arg0: i32, %arg1: i32) -> (i32, i32) {
    %c0_i32 = arith.constant 0 : i32
    %c0_i32_0 = arith.constant 0 : i32
    return %c0_i32, %arg0 : i32, i32
  }
  func.func @transform_5(%arg0: i32, %arg1: i32) -> (i32, i32) {
    %c0_i32 = arith.constant 0 : i32
    return %arg1, %arg0 : i32, i32
  }
  func.func @transform_6(%arg0: i32, %arg1: i32) -> (i32, i32) {
    %c0_i32 = arith.constant 0 : i32
    return %arg1, %arg0 : i32, i32
  }
}

</mosaic_0001>

<llo_original>
// kernel: tpu_custom_call.1
$region0: #{tpu_custom_call.1}
  #allocation0 [shape = 'u32[]', space=smem, size = 0x4, offset = 0x4, fixed_abs, tag = 'smem constant byte address 0x4 - core index']
  #allocation1 [shape = 'u32[144,128]{1,0:T(1,128)}', space=vmem, size = 0x12000, scoped, tag = 'internal scratch']
  %s0 = inlined_call_operand.vmem [shape: f32[2,16], index: 0, kind: input, shape index: {}]
  %s1 = inlined_call_operand.vmem [shape: f32[2,32], index: 1, kind: input, shape index: {}]
  %s2 = inlined_call_operand.hbm [shape: f32[2,32], index: 2, kind: input, shape index: {}, may-alias: {2,6}]
  %s3 = inlined_call_operand.hbm [shape: f32[48,128], index: 3, kind: input, shape index: {}]
  %s4 = inlined_call_operand.hbm [shape: f32[1,128], index: 4, kind: input, shape index: {}]
  %s5 = inlined_call_operand.hbm [shape: f32[2,32], index: 5, kind: output, shape index: {0}]
  %s6 = inlined_call_operand.hbm [shape: f32[2,32], index: 6, kind: output, shape index: {1}, may-alias: {2,6}]
  %7 = xla_tuple %s5, %s6
  %s8 = sld [smem:[#allocation0]]
  $region50: #{tpu_custom_call.1} parent=0
    _
  %s10 = ssub.s32 1, %s8
  %s11 = scalar_select 0, %s10, %s8
  $region1: #{tpu_custom_call.1} parent=0
    #allocation2 [shape = 'u8[1024]{0}', space=vmem, size = 0x400, scoped, tag = 'input window, operand 2, single buffered']
    #allocation3 [shape = 's32[1]{0}', space=sflag, size = 0x4, scoped, tag = 'scoped memory for tpu_custom_call.1']
    #allocation4 [shape = 's32[1]{0}', space=sflag, size = 0x4, scoped, tag = 'scoped memory for tpu_custom_call.1']
    #allocation5 [shape = 'u8[24576]{0}', space=vmem, size = 0x6000, scoped, tag = 'input window, operand 3, single buffered']
    #allocation6 [shape = 's32[1]{0}', space=sflag, size = 0x4, scoped, tag = 'scoped memory for tpu_custom_call.1']
    #allocation7 [shape = 'u8[512]{0}', space=vmem, size = 0x400, scoped, tag = 'input window, operand 4, single buffered']
    #allocation8 [shape = 'u8[1024]{0}', space=vmem, size = 0x400, scoped, tag = 'output window, operand 0, single buffered']
    #allocation9 [shape = 'u8[1024]{0}', space=vmem, size = 0x400, scoped, tag = 'output window, operand 1, single buffered']
    #allocation10 [shape = 's32[1]{0}', space=sflag, size = 0x4, scoped, tag = 'scoped memory for tpu_custom_call.1']
    %12 = vsyncpa [#allocation3], 0
    %13 = vsyncpa [#allocation6], 0
    %14 = vsyncpa [#allocation4], 0
    %15 = vsyncpa [#allocation10], 0
    // Predicated region
    $region2: #{tpu_custom_call.1} parent=1 // pred_check
      _
    $region3: #{tpu_custom_call.1} parent=1 // pred_check_branch
      %17 = sbr.rel (0) target = $region5
    $region4: #{tpu_custom_call.1} parent=1 // pred_region
      _
    $region5: #{tpu_custom_call.1} parent=1 // pred_fallthru
      _
    // Predicated region
    $region6: #{tpu_custom_call.1} parent=1 // pred_check
      _
    $region7: #{tpu_custom_call.1} parent=1 // pred_check_branch
      %19 = sbr.rel (0) target = $region9
    $region8: #{tpu_custom_call.1} parent=1 // pred_region
      _
    $region9: #{tpu_custom_call.1} parent=1 // pred_fallthru
      _
    // Predicated region
    $region10: #{tpu_custom_call.1} parent=1 // pred_check
      _
    $region11: #{tpu_custom_call.1} parent=1 // pred_check_branch
      %21 = sbr.rel (0) target = $region13
    $region12: #{tpu_custom_call.1} parent=1 // pred_region
      %s23 = ssub.s32 32, 32
      %24 = vsyncadd [#allocation3], %s23
      %s26 = sshll.u32 [#allocation2], 4
      %s27 = int_to_ptr.vmem [resolvable:$true] %s26
      %29 = dma.hbm_to_vmem [thread:$0]  %s2, 32, %s27, [#allocation3]
    $region13: #{tpu_custom_call.1} parent=1 // pred_fallthru
      _
    // Predicated region
    $region14: #{tpu_custom_call.1} parent=1 // pred_check
      _
    $region15: #{tpu_custom_call.1} parent=1 // pred_check_branch
      %31 = sbr.rel (0) target = $region17
    $region16: #{tpu_custom_call.1} parent=1 // pred_region
      %s33 = ssub.s32 768, 768
      %34 = vsyncadd [#allocation6], %s33
      %s35 = sshll.u32 [#allocation5], 4
      %s36 = int_to_ptr.vmem [resolvable:$true] %s35
      %41 = dma.hbm_to_vmem [thread:$0]  %s3, 768, %s36, [#allocation6], 128, 128, 8
    $region17: #{tpu_custom_call.1} parent=1 // pred_fallthru
      _
    // Predicated region
    $region18: #{tpu_custom_call.1} parent=1 // pred_check
      _
    $region19: #{tpu_custom_call.1} parent=1 // pred_check_branch
      %43 = sbr.rel (0) target = $region21
    $region20: #{tpu_custom_call.1} parent=1 // pred_region
      %s45 = ssub.s32 16, 16
      %46 = vsyncadd [#allocation6], %s45
      %s48 = sshll.u32 [#allocation7], 4
      %s49 = int_to_ptr.vmem [resolvable:$true] %s48
      %51 = dma.hbm_to_vmem [thread:$0]  %s4, 16, %s49, [#allocation6]
    $region21: #{tpu_custom_call.1} parent=1 // pred_fallthru
      _
    // Predicated region
    $region22: #{tpu_custom_call.1} parent=1 // pred_check
      _
    $region23: #{tpu_custom_call.1} parent=1 // pred_check_branch
      %53 = sbr.rel (0) target = $region25
    $region24: #{tpu_custom_call.1} parent=1 // pred_region
      %54 = dma.done [#allocation3], 32
    $region25: #{tpu_custom_call.1} parent=1 // pred_fallthru
      _
    // Predicated region
    $region26: #{tpu_custom_call.1} parent=1 // pred_check
      _
    $region27: #{tpu_custom_call.1} parent=1 // pred_check_branch
      %56 = sbr.rel (0) target = $region29
    $region28: #{tpu_custom_call.1} parent=1 // pred_region
      %57 = dma.done [#allocation6], 768
    $region29: #{tpu_custom_call.1} parent=1 // pred_fallthru
      _
    // Predicated region
    $region30: #{tpu_custom_call.1} parent=1 // pred_check
      _
    $region31: #{tpu_custom_call.1} parent=1 // pred_check_branch
      %59 = sbr.rel (0) target = $region33
    $region32: #{tpu_custom_call.1} parent=1 // pred_region
      %60 = dma.done [#allocation6], 16
    $region33: #{tpu_custom_call.1} parent=1 // pred_fallthru
      _
    %v61 = vld [vmem:[#allocation5] sm:$0xff]
    %v62 = vld [vmem:[#allocation5 + $0x8] sm:$0xff]
    %v63 = vld [vmem:[#allocation5 + $0x10] sm:$0xff]
    %v64 = vld [vmem:[#allocation5 + $0x18] sm:$0xff]
    %v65 = vld [vmem:[#allocation5 + $0x20] sm:$0xff]
    %v66 = vld [vmem:[#allocation5 + $0x28] sm:$0xff]
    %v67 = vld [vmem:[%s0] sm:$0x3]
    %v68 = vld [vmem:[%s1] sm:$0x3]
    %70 = vrot.lane.b32.xlu0 %v68, 16
    %v71 = vpop.permute.xlu0 %70
    %vm73 = vcmask 130048
    %v74 = vsel %vm73, %v67, %v71
    %v75 = vld [vmem:[#allocation7] sm:$0x1]
    %v77 = vlaneseq
    %v78 = vshrl.u32 %v77, 7
    %v79 = vsub.s32 0, %v78
    %v80 = vrot.slane %v75, %v79
    %vm82 = vcmask 392192
    %v84 = vsel %vm82, %v74, 0
    %86 = vmatprep.subr.mxu0 0.0
    %87 = vmatpush1.msra.mxu0 0.0
    %88 = vmatprep.subr.mxu0 0.0
    %89 = vmatpush1.msra.mxu0 0.0
    %90 = vmatprep.subr.mxu0 0.0
    %91 = vmatpush1.msra.mxu0 0.0
    %92 = vmatprep.subr.mxu0 0.0
    %93 = vmatpush1.msra.mxu0 0.0
    %94 = vmatprep.subr.mxu0 0.0
    %95 = vmatpush1.msra.mxu0 0.0
    %96 = vmatprep.subr.mxu0 0.0
    %97 = vmatpush1.msra.mxu0 0.0
    %98 = vmatprep.subr.mxu0 0.0
    %99 = vmatpush1.msra.mxu0 0.0
    %100 = vmatprep.subr.mxu0 0.0
    %101 = vmatpush1.msra.mxu0 0.0
    %102 = vmatprep.subr.mxu0 0.0
    %103 = vmatpush1.msra.mxu0 0.0
    %104 = vmatprep.subr.mxu0 0.0
    %105 = vmatpush1.msra.mxu0 0.0
    %106 = vmatprep.subr.mxu0 0.0
    %107 = vmatpush1.msra.mxu0 %v66
    %108 = vmatprep.subr.mxu0 0.0
    %109 = vmatpush1.msra.mxu0 %v65
    %110 = vmatprep.subr.mxu0 0.0
    %111 = vmatpush1.msra.mxu0 %v64
    %112 = vmatprep.subr.mxu0 0.0
    %113 = vmatpush1.msra.mxu0 %v63
    %114 = vmatprep.subr.mxu0 0.0
    %115 = vmatpush1.msra.mxu0 %v62
    %116 = vmatprep.subr.mxu0 0.0
    %117 = vmatpush1.msra.mxu0 %v61
    %118 = vmatprep.subr.mxu0 0.0
    %119 = vmatpush2.msra.mxu0 0.0
    %120 = vmatprep.subr.mxu0 0.0
    %121 = vmatpush2.msra.mxu0 0.0
    %122 = vmatprep.subr.mxu0 0.0
    %123 = vmatpush2.msra.mxu0 0.0
    %124 = vmatprep.subr.mxu0 0.0
    %125 = vmatpush2.msra.mxu0 0.0
    %126 = vmatprep.subr.mxu0 0.0
    %127 = vmatpush2.msra.mxu0 0.0
    %128 = vmatprep.subr.mxu0 0.0
    %129 = vmatpush2.msra.mxu0 0.0
    %130 = vmatprep.subr.mxu0 0.0
    %131 = vmatpush2.msra.mxu0 0.0
    %132 = vmatprep.subr.mxu0 0.0
    %133 = vmatpush2.msra.mxu0 0.0
    %134 = vmatprep.subr.mxu0 0.0
    %135 = vmatpush2.msra.mxu0 0.0
    %136 = vmatprep.subr.mxu0 0.0
    %137 = vmatpush2.msra.mxu0 0.0
    %138 = vmatprep.subr.mxu0 0.0
    %139 = vmatpush2.msra.mxu0 0.0
    %140 = vmatprep.subr.mxu0 0.0
    %141 = vmatpush2.msra.mxu0 0.0
    %142 = vmatprep.subr.mxu0 0.0
    %143 = vmatpush2.msra.mxu0 0.0
    %144 = vmatprep.subr.mxu0 0.0
    %145 = vmatpush2.msra.mxu0 0.0
    %146 = vmatprep.subr.mxu0 0.0
    %147 = vmatpush2.msra.mxu0 0.0
    %148 = vmatprep.subr.mxu0 0.0
    %149 = vmatpush2.msra.mxu0 0.0
    %150 = vmatprep.mubr.f32.mxu0 0.0
    %151 = vmatmul.mubr.f32.gmra.mxu0 %v84
    %v152 = vpop.f32.mrf.mxu0
    %v153 = vadd.f32 %v80, %v152
    %v154 = vpop.f32.mrf.mxu0
    %155 = vdwg.mxu0
    %v156 = vmul.f32 %v153, 0.5
    %v157 = vtanh.pop %v156
    %v158 = vadd.f32 %v157, 1.0
    %v159 = vmul.f32 %v158, 0.5
    %v160 = vtanh.pop %v153
    %v161 = vld [vmem:[#allocation2] sm:$0x3]
    %v162 = vmul.f32 %v159, %v161
    %164 = vrot.lane.b32.xlu0 %v160, 96
    %v165 = vpop.permute.xlu0 %164
    %v167 = vmul.f32 %v159, %v165
    %169 = vrot.lane.b32.xlu0 %v167, 96
    %v170 = vpop.permute.xlu0 %169
    %v172 = vadd.f32 %v162, %v170
    %v173 = vtanh.pop %v172
    %175 = vrot.lane.b32.xlu0 %v173, 96
    %v176 = vpop.permute.xlu0 %175
    %v178 = vmul.f32 %v159, %v176
    %180 = vrot.lane.b32.xlu0 %v178, 32
    %v181 = vpop.permute.xlu0 %180
    %vm183 = vcmask 254976
    %184 = vst.msk [vmem:[#allocation8] sm:$0x3] %vm183, %v181
    %185 = vst.msk [vmem:[#allocation9] sm:$0x3] %vm183, %v172
    // Predicated region
    $region34: #{tpu_custom_call.1} parent=1 // pred_check
      _
    $region35: #{tpu_custom_call.1} parent=1 // pred_check_branch
      %187 = sbr.rel (0) target = $region37
    $region36: #{tpu_custom_call.1} parent=1 // pred_region
      %s189 = ssub.s32 32, 32
      %190 = vsyncadd [#allocation4], %s189
      %s192 = sshll.u32 [#allocation8], 4
      %s193 = int_to_ptr.vmem [resolvable:$true] %s192
      %195 = dma.vmem_to_hbm [thread:$0]  %s193, 32, %s5, [#allocation4]
    $region37: #{tpu_custom_call.1} parent=1 // pred_fallthru
      _
    // Predicated region
    $region38: #{tpu_custom_call.1} parent=1 // pred_check
      _
    $region39: #{tpu_custom_call.1} parent=1 // pred_check_branch
      %197 = sbr.rel (0) target = $region41
    $region40: #{tpu_custom_call.1} parent=1 // pred_region
      %s199 = ssub.s32 32, 32
      %200 = vsyncadd [#allocation10], %s199
      %s202 = sshll.u32 [#allocation9], 4
      %s203 = int_to_ptr.vmem [resolvable:$true] %s202
      %205 = dma.vmem_to_hbm [thread:$0]  %s203, 32, %s6, [#allocation10]
    $region41: #{tpu_custom_call.1} parent=1 // pred_fallthru
      _
    // Predicated region
    $region42: #{tpu_custom_call.1} parent=1 // pred_check
      _
    $region43: #{tpu_custom_call.1} parent=1 // pred_check_branch
      %207 = sbr.rel (0) target = $region45
    $region44: #{tpu_custom_call.1} parent=1 // pred_region
      %208 = dma.done [#allocation4], 32
    $region45: #{tpu_custom_call.1} parent=1 // pred_fallthru
      _
    // Predicated region
    $region46: #{tpu_custom_call.1} parent=1 // pred_check
      _
    $region47: #{tpu_custom_call.1} parent=1 // pred_check_branch
      %210 = sbr.rel (0) target = $region49
    $region48: #{tpu_custom_call.1} parent=1 // pred_region
      %211 = dma.done [#allocation10], 32
    $region49: #{tpu_custom_call.1} parent=1 // pred_fallthru
      _
    %212 = vsyncpa [#allocation3], 1
    %213 = vsyncpa [#allocation6], 1
    %214 = vsyncpa [#allocation4], 1
    %215 = vsyncpa [#allocation10], 1

</llo_original>
